<compile_context>
chip_gen: v7x
topology: tpu7x:2x2x1
jax: 0.10.0
libtpu: 0.0.40
codegen_flags: <defaults>
</compile_context>

<pallas_src>
import jax
import jax.numpy as jnp
from jax.experimental import pallas as pl
from jax.experimental.pallas import tpu as pltpu


def attnet_kernel(x_ref, w1_ref, bias_ref, w2_ref, o_ref):
    # fc_1 (bias + BN already folded into w1 / bias row 0), f32 accumulate + ReLU.
    x = x_ref[...]                                                   # (bb, IN)
    h = jnp.dot(x, w1_ref[...], preferred_element_type=jnp.float32)  # (bb, D) f32
    h = jnp.maximum(h + bias_ref[0:1, :], 0.0)                       # f32 epilogue
    # fc_2: feed the MXU in the weights' dtype (bf16 on the fast path), f32 acc.
    h = h.astype(w2_ref.dtype)
    y = jnp.dot(h, w2_ref[...], preferred_element_type=jnp.float32)
    o_ref[...] = (y + bias_ref[1:2, :]).astype(o_ref.dtype)


def _round_up(x, m):
    return ((x + m - 1) // m) * m


def att_net(att, w1, b1, bn_gamma, bn_beta, bn_mean, bn_var, w2, b2,
            eps=1e-3, block_b=4096, use_bf16=True):
    """AttNet forward.  w1: [40, D], w2: [D, D] stored pre-transposed (x @ W)."""
    B, IN = att.shape
    D = w1.shape[1]

    # --- fold eval-mode BN + fc_1 bias into the fc_1 weights (plain JAX glue) ---
    scale = bn_gamma * jax.lax.rsqrt(bn_var + eps)           # [D]
    w1_fused = w1 * scale[None, :]                            # [IN, D]
    shift1 = (b1 - bn_mean) * scale + bn_beta                 # [D]
    biases = jnp.stack([shift1, b2], axis=0).astype(jnp.float32)   # [2, D], f32

    mxu_dtype = jnp.bfloat16 if use_bf16 else jnp.float32
    x_in = att.astype(mxu_dtype)
    w1_in = w1_fused.astype(mxu_dtype)
    w2_in = w2.astype(mxu_dtype)

    # --- batch tiling ---------------------------------------------------------
    # Big row blocks (per-grid-step overhead amortization); if one block would
    # cover a large batch, split it so >= 2 "parallel" steps exist (v7x megacore).
    MULT = 32  # sublane multiple that is safe for f32 (8) and bf16 (16) blocks
    bb = min(block_b, B)
    if bb != B:
        bb = max(MULT, (bb // MULT) * MULT)
    elif B >= 2 * MULT:
        half = _round_up(pl.cdiv(B, 2), MULT)
        if half < B:
            bb = half
    grid = (pl.cdiv(B, bb),)

    return pl.pallas_call(
        attnet_kernel,
        out_shape=jax.ShapeDtypeStruct((B, D), jnp.float32),
        grid=grid,
        in_specs=[
            pl.BlockSpec((bb, IN), lambda i: (i, 0)),   # activations: tiled over batch
            pl.BlockSpec((IN, D), lambda i: (0, 0)),    # fused fc_1 weights (resident)
            pl.BlockSpec((2, D), lambda i: (0, 0)),     # stacked biases (resident)
            pl.BlockSpec((D, D), lambda i: (0, 0)),     # fc_2 weights (resident)
        ],
        out_specs=pl.BlockSpec((bb, D), lambda i: (i, 0)),
        compiler_params=pltpu.CompilerParams(
            dimension_semantics=("parallel",)),
    )(x_in, w1_in, biases, w2_in)


if __name__ == "__main__":
    IN = 40               # attribute input dim (fixed by the module)
    D = 32                # embedding_dimensionality

    key = jax.random.PRNGKey(0)
    k = jax.random.split(key, 9)

    # fc_1 params (stored pre-transposed as [in, out] so forward is x @ W)
    w1 = jax.random.normal(k[1], (IN, D), dtype=jnp.float32) * 0.1
    b1 = jax.random.normal(k[2], (D,), dtype=jnp.float32) * 0.1
    # BatchNorm1d params / running stats (eps=0.001 as in the module)
    bn_gamma = 1.0 + 0.1 * jax.random.normal(k[3], (D,), dtype=jnp.float32)
    bn_beta = 0.1 * jax.random.normal(k[4], (D,), dtype=jnp.float32)
    bn_mean = 0.05 * jax.random.normal(k[5], (D,), dtype=jnp.float32)
    bn_var = jnp.abs(1.0 + 0.1 * jax.random.normal(k[6], (D,), dtype=jnp.float32))
    # fc_2 params
    w2 = jax.random.normal(k[7], (D, D), dtype=jnp.float32) * 0.1
    b2 = jnp.linspace(-0.1, 0.1, D, dtype=jnp.float32)

    def reference(x):
        h = x @ w1 + b1
        h = (h - bn_mean) / jnp.sqrt(bn_var + 1e-3) * bn_gamma + bn_beta
        h = jnp.maximum(h, 0.0)
        return h @ w2 + b2

    # 1) Small batch, exact f32 path -> tight check.
    B = 8
    att = jax.random.normal(k[0], (B, IN), dtype=jnp.float32)
    out_f32 = jax.block_until_ready(
        att_net(att, w1, b1, bn_gamma, bn_beta, bn_mean, bn_var, w2, b2,
                use_bf16=False))
    assert jnp.allclose(out_f32, reference(att), atol=1e-5, rtol=1e-5), \
        "f32 path mismatch vs reference"

    # 2) Same inputs, bf16 MXU path (default) -> bf16-level tolerance.
    out_bf16 = jax.block_until_ready(
        att_net(att, w1, b1, bn_gamma, bn_beta, bn_mean, bn_var, w2, b2))
    assert jnp.allclose(out_bf16, reference(att), atol=5e-2, rtol=5e-2), \
        "bf16 path mismatch vs reference"

    # 3) Larger batch exercising a multi-step batch grid (>=2 parallel steps for
    #    v7x) and a partial last block.
    B2 = 1000
    att2 = jax.random.normal(k[8], (B2, IN), dtype=jnp.float32)
    out2 = jax.block_until_ready(
        att_net(att2, w1, b1, bn_gamma, bn_beta, bn_mean, bn_var, w2, b2))
    assert out2.shape == (B2, D)
    assert jnp.allclose(out2, reference(att2), atol=5e-2, rtol=5e-2), \
        "large-batch bf16 path mismatch vs reference"

    print("KERNEL_OK")
</pallas_src>

<mosaic_0001>
module attributes {stable_mosaic.version = 11 : i64} {
  func.func @attnet_kernel(%arg0: i32, %arg1: memref<8x40xf32, #tpu.memory_space<vmem>>, %arg2: memref<40x32xf32, #tpu.memory_space<vmem>>, %arg3: memref<2x32xf32, #tpu.memory_space<vmem>>, %arg4: memref<32x32xf32, #tpu.memory_space<vmem>>, %arg5: memref<8x32xf32, #tpu.memory_space<vmem>>) attributes {dimension_semantics = [#tpu.dimension_semantics<parallel>], iteration_bounds = array<i64: 1>, scalar_prefetch = 0 : i64, scratch_operands = 0 : i64, tpu.core_type = #tpu.core_type<tc>, window_params = [{transform_indices = @transform_0, window_bounds = array<i64: 8, 40>}, {pipeline_mode = #tpu.pipeline_mode<synchronous>, transform_indices = @transform_1, window_bounds = array<i64: 40, 32>}, {pipeline_mode = #tpu.pipeline_mode<synchronous>, transform_indices = @transform_2, window_bounds = array<i64: 2, 32>}, {pipeline_mode = #tpu.pipeline_mode<synchronous>, transform_indices = @transform_3, window_bounds = array<i64: 32, 32>}, {transform_indices = @transform_4, window_bounds = array<i64: 8, 32>}]} {
    %c0 = arith.constant 0 : index
    %c0_0 = arith.constant 0 : index
    %0 = vector.load %arg1[%c0, %c0_0] : memref<8x40xf32, #tpu.memory_space<vmem>>, vector<8x40xf32>
    %c0_1 = arith.constant 0 : index
    %c0_2 = arith.constant 0 : index
    %1 = vector.load %arg2[%c0_1, %c0_2] : memref<40x32xf32, #tpu.memory_space<vmem>>, vector<40x32xf32>
    %cst = arith.constant dense<0.000000e+00> : vector<8x32xf32>
    %2 = tpu.matmul %0, %1, %cst {dimension_numbers = #tpu.dot_dimension_numbers<[1], [0], [0], [1], [0, 0, 1, 1], [], []>} : vector<8x40xf32>, vector<40x32xf32>, vector<8x32xf32> -> vector<8x32xf32>
    %c0_3 = arith.constant 0 : index
    %c0_4 = arith.constant 0 : index
    %3 = vector.load %arg3[%c0_3, %c0_4] : memref<2x32xf32, #tpu.memory_space<vmem>>, vector<1x32xf32>
    %4 = vector.broadcast %3 : vector<1x32xf32> to vector<8x32xf32>
    %5 = arith.addf %2, %4 : vector<8x32xf32>
    %cst_5 = arith.constant 0.000000e+00 : f32
    %6 = vector.broadcast %cst_5 : f32 to vector<8x32xf32>
    %7 = arith.maximumf %5, %6 : vector<8x32xf32>
    %c0_6 = arith.constant 0 : index
    %c0_7 = arith.constant 0 : index
    %8 = vector.load %arg4[%c0_6, %c0_7] : memref<32x32xf32, #tpu.memory_space<vmem>>, vector<32x32xf32>
    %cst_8 = arith.constant dense<0.000000e+00> : vector<8x32xf32>
    %9 = tpu.matmul %7, %8, %cst_8 {dimension_numbers = #tpu.dot_dimension_numbers<[1], [0], [0], [1], [0, 0, 1, 1], [], []>} : vector<8x32xf32>, vector<32x32xf32>, vector<8x32xf32> -> vector<8x32xf32>
    %c1 = arith.constant 1 : index
    %c0_9 = arith.constant 0 : index
    %10 = vector.load %arg3[%c1, %c0_9] : memref<2x32xf32, #tpu.memory_space<vmem>>, vector<1x32xf32>
    %11 = vector.broadcast %10 : vector<1x32xf32> to vector<8x32xf32>
    %12 = arith.addf %9, %11 : vector<8x32xf32>
    %c0_10 = arith.constant 0 : index
    %c0_11 = arith.constant 0 : index
    %13 = vector.load %arg5[%c0_10, %c0_11] : memref<8x32xf32, #tpu.memory_space<vmem>>, vector<8x32xf32>
    tpu.vector_store %arg5[%c0_10, %c0_11], %12 {strides = array<i32>} : memref<8x32xf32, #tpu.memory_space<vmem>>, vector<8x32xf32>,
    return
  }
  func.func @transform_0(%arg0: i32) -> (i32, i32) {
    %c0_i32 = arith.constant 0 : i32
    %c0_i32_0 = arith.constant 0 : i32
    return %arg0, %c0_i32 : i32, i32
  }
  func.func @transform_1(%arg0: i32) -> (i32, i32) {
    %c0_i32 = arith.constant 0 : i32
    %c0_i32_0 = arith.constant 0 : i32
    %c0_i32_1 = arith.constant 0 : i32
    return %c0_i32, %c0_i32_0 : i32, i32
  }
  func.func @transform_2(%arg0: i32) -> (i32, i32) {
    %c0_i32 = arith.constant 0 : i32
    %c0_i32_0 = arith.constant 0 : i32
    %c0_i32_1 = arith.constant 0 : i32
    return %c0_i32, %c0_i32_0 : i32, i32
  }
  func.func @transform_3(%arg0: i32) -> (i32, i32) {
    %c0_i32 = arith.constant 0 : i32
    %c0_i32_0 = arith.constant 0 : i32
    %c0_i32_1 = arith.constant 0 : i32
    return %c0_i32, %c0_i32_0 : i32, i32
  }
  func.func @transform_4(%arg0: i32) -> (i32, i32) {
    %c0_i32 = arith.constant 0 : i32
    %c0_i32_0 = arith.constant 0 : i32
    return %arg0, %c0_i32 : i32, i32
  }
}

</mosaic_0001>

<llo_original>
// kernel: tpu_custom_call.1
$region0: #{tpu_custom_call.1}
  #allocation0 [shape = 'u32[]', space=smem, size = 0x4, offset = 0x4, fixed_abs, tag = 'smem constant byte address 0x4 - core index']
  #allocation1 [shape = 'u32[144,128]{1,0:T(1,128)}', space=vmem, size = 0x12000, scoped, tag = 'internal scratch']
  %s0 = inlined_call_operand.vmem [shape: f32[8,40], index: 0, kind: input, shape index: {}]
  %s1 = inlined_call_operand.vmem [shape: f32[40,32], index: 1, kind: input, shape index: {}]
  %s2 = inlined_call_operand.vmem [shape: f32[2,32], index: 2, kind: input, shape index: {}]
  %s3 = inlined_call_operand.vmem [shape: f32[32,32], index: 3, kind: input, shape index: {}]
  %s4 = inlined_call_operand.hbm [shape: f32[8,32], index: 4, kind: output, shape index: {}]
  %s5 = sld [smem:[#allocation0]]
  $region26: #{tpu_custom_call.1} parent=0
    _
  %s7 = ssub.s32 1, %s5
  %s8 = scalar_select 0, %s7, %s5
  $region1: #{tpu_custom_call.1} parent=0
    #allocation2 [shape = 'u8[4096]{0}', space=vmem, size = 0x1000, scoped, tag = 'output window, operand 0, single buffered']
    #allocation3 [shape = 's32[1]{0}', space=sflag, size = 0x4, scoped, tag = 'scoped memory for tpu_custom_call.1']
    %9 = vsyncpa [#allocation3], 0
    // Predicated region
    $region2: #{tpu_custom_call.1} parent=1 // pred_check
      _
    $region3: #{tpu_custom_call.1} parent=1 // pred_check_branch
      %11 = sbr.rel (0) target = $region5
    $region4: #{tpu_custom_call.1} parent=1 // pred_region
      _
    $region5: #{tpu_custom_call.1} parent=1 // pred_fallthru
      _
    // Predicated region
    $region6: #{tpu_custom_call.1} parent=1 // pred_check
      _
    $region7: #{tpu_custom_call.1} parent=1 // pred_check_branch
      %13 = sbr.rel (0) target = $region9
    $region8: #{tpu_custom_call.1} parent=1 // pred_region
      _
    $region9: #{tpu_custom_call.1} parent=1 // pred_fallthru
      _
    // Predicated region
    $region10: #{tpu_custom_call.1} parent=1 // pred_check
      _
    $region11: #{tpu_custom_call.1} parent=1 // pred_check_branch
      %15 = sbr.rel (0) target = $region13
    $region12: #{tpu_custom_call.1} parent=1 // pred_region
      _
    $region13: #{tpu_custom_call.1} parent=1 // pred_fallthru
      _
    // Predicated region
    $region14: #{tpu_custom_call.1} parent=1 // pred_check
      _
    $region15: #{tpu_custom_call.1} parent=1 // pred_check_branch
      %17 = sbr.rel (0) target = $region17
    $region16: #{tpu_custom_call.1} parent=1 // pred_region
      _
    $region17: #{tpu_custom_call.1} parent=1 // pred_fallthru
      _
    %v18 = vld [vmem:[%s0] sm:$0xff]
    %v19 = vld [vmem:[%s1] sm:$0xff]
    %v20 = vld [vmem:[%s1 + $0x8] sm:$0xff]
    %v21 = vld [vmem:[%s1 + $0x10] sm:$0xff]
    %v22 = vld [vmem:[%s1 + $0x18] sm:$0xff]
    %v23 = vld [vmem:[%s1 + $0x20] sm:$0xff]
    %v24 = vld [vmem:[%s2] sm:$0x1]
    %v25 = vlaneseq
    %v26 = vshrl.u32 %v25, 7
    %v27 = vsub.s32 0, %v26
    %v28 = vrot.slane %v24, %v27
    %vm29 = vcmask 326656
    %v31 = vsel %vm29, %v18, 0
    %33 = vmatprep.subr.mxu0 0.0
    %34 = vmatpush1.msra.mxu0 %v19
    %35 = vmatprep.subr.mxu0 0.0
    %36 = vmatpush1.msra.mxu0 %v20
    %37 = vmatprep.subr.mxu0 0.0
    %38 = vmatpush1.msra.mxu0 %v21
    %39 = vmatprep.subr.mxu0 0.0
    %40 = vmatpush1.msra.mxu0 %v22
    %41 = vmatprep.subr.mxu0 0.0
    %42 = vmatpush1.msra.mxu0 %v23
    %43 = vmatprep.subr.mxu0 0.0
    %44 = vmatpush1.msra.mxu0 0.0
    %45 = vmatprep.subr.mxu0 0.0
    %46 = vmatpush1.msra.mxu0 0.0
    %47 = vmatprep.subr.mxu0 0.0
    %48 = vmatpush1.msra.mxu0 0.0
    %49 = vmatprep.subr.mxu0 0.0
    %50 = vmatpush1.msra.mxu0 0.0
    %51 = vmatprep.subr.mxu0 0.0
    %52 = vmatpush1.msra.mxu0 0.0
    %53 = vmatprep.subr.mxu0 0.0
    %54 = vmatpush1.msra.mxu0 0.0
    %55 = vmatprep.subr.mxu0 0.0
    %56 = vmatpush1.msra.mxu0 0.0
    %57 = vmatprep.subr.mxu0 0.0
    %58 = vmatpush1.msra.mxu0 0.0
    %59 = vmatprep.subr.mxu0 0.0
    %60 = vmatpush1.msra.mxu0 0.0
    %61 = vmatprep.subr.mxu0 0.0
    %62 = vmatpush1.msra.mxu0 0.0
    %63 = vmatprep.subr.mxu0 0.0
    %64 = vmatpush1.msra.mxu0 0.0
    %65 = vmatprep.subr.mxu0 0.0
    %66 = vmatpush1.msra.mxu0 0.0
    %67 = vmatprep.subr.mxu0 0.0
    %68 = vmatpush1.msra.mxu0 0.0
    %69 = vmatprep.subr.mxu0 0.0
    %70 = vmatpush1.msra.mxu0 0.0
    %71 = vmatprep.subr.mxu0 0.0
    %72 = vmatpush1.msra.mxu0 0.0
    %73 = vmatprep.subr.mxu0 0.0
    %74 = vmatpush1.msra.mxu0 0.0
    %75 = vmatprep.subr.mxu0 0.0
    %76 = vmatpush1.msra.mxu0 0.0
    %77 = vmatprep.subr.mxu0 0.0
    %78 = vmatpush1.msra.mxu0 0.0
    %79 = vmatprep.subr.mxu0 0.0
    %80 = vmatpush1.msra.mxu0 0.0
    %81 = vmatprep.subr.mxu0 0.0
    %82 = vmatpush1.msra.mxu0 0.0
    %83 = vmatprep.subr.mxu0 0.0
    %84 = vmatpush1.msra.mxu0 0.0
    %85 = vmatprep.subr.mxu0 0.0
    %86 = vmatpush1.msra.mxu0 0.0
    %87 = vmatprep.subr.mxu0 0.0
    %88 = vmatpush1.msra.mxu0 0.0
    %89 = vmatprep.subr.mxu0 0.0
    %90 = vmatpush1.msra.mxu0 0.0
    %91 = vmatprep.subr.mxu0 0.0
    %92 = vmatpush1.msra.mxu0 0.0
    %93 = vmatprep.subr.mxu0 0.0
    %94 = vmatpush1.msra.mxu0 0.0
    %95 = vmatprep.subr.mxu0 0.0
    %96 = vmatpush1.msra.mxu0 0.0
    %97 = vmatprep.mubr.f32.mxu0 0.0
    %98 = vmatmul.mubr.f32.gmra.mrb[0].mxu0 %v31
    %v99 = vpop.f32.mrb[0].mxu0
    %v100 = vadd.f32 %v28, %v99
    %v101 = vpop.f32.mrb[0].mxu0
    %102 = vdwg.mxu0
    %v103 = vmax.f32 %v100, 0.0
    %v104 = vld [vmem:[%s3] sm:$0xff]
    %v105 = vld [vmem:[%s3 + $0x8] sm:$0xff]
    %v106 = vld [vmem:[%s3 + $0x10] sm:$0xff]
    %v107 = vld [vmem:[%s3 + $0x18] sm:$0xff]
    %v108 = vld [vmem:[%s2 + $0x1] sm:$0x1]
    %v109 = vlaneseq
    %v110 = vshrl.u32 %v109, 7
    %v111 = vsub.s32 0, %v110
    %v112 = vrot.slane %v108, %v111
    %vm113 = vcmask 261120
    %v115 = vsel %vm113, %v103, 0
    %117 = vmatprep.subr.mxu0 0.0
    %118 = vmatpush1.msra.mxu0 %v104
    %119 = vmatprep.subr.mxu0 0.0
    %120 = vmatpush1.msra.mxu0 %v105
    %121 = vmatprep.subr.mxu0 0.0
    %122 = vmatpush1.msra.mxu0 %v106
    %123 = vmatprep.subr.mxu0 0.0
    %124 = vmatpush1.msra.mxu0 %v107
    %125 = vmatprep.subr.mxu0 0.0
    %126 = vmatpush1.msra.mxu0 0.0
    %127 = vmatprep.subr.mxu0 0.0
    %128 = vmatpush1.msra.mxu0 0.0
    %129 = vmatprep.subr.mxu0 0.0
    %130 = vmatpush1.msra.mxu0 0.0
    %131 = vmatprep.subr.mxu0 0.0
    %132 = vmatpush1.msra.mxu0 0.0
    %133 = vmatprep.subr.mxu0 0.0
    %134 = vmatpush1.msra.mxu0 0.0
    %135 = vmatprep.subr.mxu0 0.0
    %136 = vmatpush1.msra.mxu0 0.0
    %137 = vmatprep.subr.mxu0 0.0
    %138 = vmatpush1.msra.mxu0 0.0
    %139 = vmatprep.subr.mxu0 0.0
    %140 = vmatpush1.msra.mxu0 0.0
    %141 = vmatprep.subr.mxu0 0.0
    %142 = vmatpush1.msra.mxu0 0.0
    %143 = vmatprep.subr.mxu0 0.0
    %144 = vmatpush1.msra.mxu0 0.0
    %145 = vmatprep.subr.mxu0 0.0
    %146 = vmatpush1.msra.mxu0 0.0
    %147 = vmatprep.subr.mxu0 0.0
    %148 = vmatpush1.msra.mxu0 0.0
    %149 = vmatprep.subr.mxu0 0.0
    %150 = vmatpush1.msra.mxu0 0.0
    %151 = vmatprep.subr.mxu0 0.0
    %152 = vmatpush1.msra.mxu0 0.0
    %153 = vmatprep.subr.mxu0 0.0
    %154 = vmatpush1.msra.mxu0 0.0
    %155 = vmatprep.subr.mxu0 0.0
    %156 = vmatpush1.msra.mxu0 0.0
    %157 = vmatprep.subr.mxu0 0.0
    %158 = vmatpush1.msra.mxu0 0.0
    %159 = vmatprep.subr.mxu0 0.0
    %160 = vmatpush1.msra.mxu0 0.0
    %161 = vmatprep.subr.mxu0 0.0
    %162 = vmatpush1.msra.mxu0 0.0
    %163 = vmatprep.subr.mxu0 0.0
    %164 = vmatpush1.msra.mxu0 0.0
    %165 = vmatprep.subr.mxu0 0.0
    %166 = vmatpush1.msra.mxu0 0.0
    %167 = vmatprep.subr.mxu0 0.0
    %168 = vmatpush1.msra.mxu0 0.0
    %169 = vmatprep.subr.mxu0 0.0
    %170 = vmatpush1.msra.mxu0 0.0
    %171 = vmatprep.subr.mxu0 0.0
    %172 = vmatpush1.msra.mxu0 0.0
    %173 = vmatprep.subr.mxu0 0.0
    %174 = vmatpush1.msra.mxu0 0.0
    %175 = vmatprep.subr.mxu0 0.0
    %176 = vmatpush1.msra.mxu0 0.0
    %177 = vmatprep.subr.mxu0 0.0
    %178 = vmatpush1.msra.mxu0 0.0
    %179 = vmatprep.subr.mxu0 0.0
    %180 = vmatpush1.msra.mxu0 0.0
    %181 = vmatprep.mubr.f32.mxu0 0.0
    %182 = vmatmul.mubr.f32.gmra.mrb[0].mxu0 %v115
    %v183 = vpop.f32.mrb[0].mxu0
    %v184 = vadd.f32 %v112, %v183
    %v185 = vpop.f32.mrb[0].mxu0
    %186 = vdwg.mxu0
    %187 = vst.msk [vmem:[#allocation2] sm:$0xff] %vm113, %v184
    // Predicated region
    $region18: #{tpu_custom_call.1} parent=1 // pred_check
      _
    $region19: #{tpu_custom_call.1} parent=1 // pred_check_branch
      %189 = sbr.rel (0) target = $region21
    $region20: #{tpu_custom_call.1} parent=1 // pred_region
      %s191 = ssub.s32 128, 128
      %192 = vsyncadd [#allocation3], %s191
      %s194 = sshll.u32 [#allocation2], 4
      %s195 = int_to_ptr.vmem [resolvable:$true] %s194
      %197 = dma.vmem_to_hbm [thread:$0]  %s195, 128, %s4, [#allocation3]
    $region21: #{tpu_custom_call.1} parent=1 // pred_fallthru
      _
    // Predicated region
    $region22: #{tpu_custom_call.1} parent=1 // pred_check
      _
    $region23: #{tpu_custom_call.1} parent=1 // pred_check_branch
      %199 = sbr.rel (0) target = $region25
    $region24: #{tpu_custom_call.1} parent=1 // pred_region
      %200 = dma.done [#allocation3], 128
    $region25: #{tpu_custom_call.1} parent=1 // pred_fallthru
      _
    %201 = vsyncpa [#allocation3], 1

</llo_original>
